<compile_context>
chip_gen: v5e
topology: v5e:2x2
jax: 0.10.0
libtpu: 0.0.40
codegen_flags: <defaults>
</compile_context>

<pallas_src>
import math

import jax
import jax.numpy as jnp
from jax import lax
from jax.experimental import pallas as pl
from jax.experimental.pallas import tpu as pltpu


# ---------------------------------------------------------------------------
# Operand packing: every operand lives in a disjoint static region of one
# (8, 128) f32 slab (exactly one vreg / one input DMA).
# ---------------------------------------------------------------------------
_SLAB_SHAPE = (8, 128)
# (rows, cols, lane offset) for each operand inside the slab.
_QR, _QC, _QO = 6, 5, 0       # q_raw  ~ torch.randn([1, 6, 5])  (squeezed)
_KR, _KC, _KO = 6, 10, 16     # k      ~ torch.randn([1, 6, 10])
_VR, _VC, _VO = 6, 10, 32     # v_raw  ~ torch.randn([1, 6, 10])
_BR, _BC, _BO = 5, 10, 48     # bias   (minimal consistent fix of randn([1,12,12]))

_M, _N, _DV = _QC, _KC, _VR   # output: (5, 6)
# Module divides by sqrt(k.shape[-1]) = sqrt(10): the key *sequence length*,
# not the head dim — kept faithfully (nonstandard SDPA scaling).
_SCALE = 1.0 / math.sqrt(_KC)


def _sdpa_kernel(slab_ref, o_ref):
    q_raw = slab_ref[0:_QR, _QO:_QO + _QC]   # (6, 5)  f32
    k     = slab_ref[0:_KR, _KO:_KO + _KC]   # (6, 10)
    v_raw = slab_ref[0:_VR, _VO:_VO + _VC]   # (6, 10)
    bias  = slab_ref[0:_BR, _BO:_BO + _BC]   # (5, 10)

    # scores = Q @ K * scale + bias with Q = q_raw^T: the transpose is folded
    # into the contraction (contract q_raw axis 0 against k axis 0).
    s = lax.dot_general(
        q_raw.astype(jnp.bfloat16), k.astype(jnp.bfloat16),
        dimension_numbers=(((0,), (0,)), ((), ())),
        preferred_element_type=jnp.float32,
    ) * _SCALE + bias                                            # (5, 10) f32

    # softmax #1: max-subtracted for numerical safety.
    m = jnp.max(s, axis=-1, keepdims=True)
    e1 = jnp.exp(s - m)
    p1 = e1 * pl.reciprocal(jnp.sum(e1, axis=-1, keepdims=True), approx=True)

    # softmax #2: inputs lie in (0, 1] so exp cannot overflow -> skip the max
    # subtraction (saves an XLU reduce + broadcast + vsub per row).
    e2 = jnp.exp(p1)
    p2 = e2 * pl.reciprocal(jnp.sum(e2, axis=-1, keepdims=True), approx=True)

    # output = probs @ V with V = v_raw^T: second transpose also folded into
    # the contraction (contract p2 axis 1 against v_raw axis 1).
    o_ref[...] = lax.dot_general(
        p2.astype(jnp.bfloat16), v_raw.astype(jnp.bfloat16),
        dimension_numbers=(((1,), (1,)), ((), ())),
        preferred_element_type=jnp.float32,
    )                                                            # (5, 6) f32


def _sdpa_call(slab):
    """Gridless pallas_call: whole slab / output are single VMEM blocks."""
    return pl.pallas_call(
        _sdpa_kernel,
        out_shape=jax.ShapeDtypeStruct((_M, _DV), jnp.float32),
        in_specs=[pl.BlockSpec(memory_space=pltpu.MemorySpace.VMEM)],
        out_specs=pl.BlockSpec(memory_space=pltpu.MemorySpace.VMEM),
    )(slab)


@jax.jit
def model_forward(input_tensor, key):
    """Mirrors Model.forward: `input_tensor` is accepted but unused; the
    q/k/v/bias tensors are drawn internally (deterministically from `key`)."""
    del input_tensor  # the PyTorch module ignores its input
    # One RNG fusion produces the whole packed operand slab (entries are iid
    # N(0,1), distributionally identical to four separate torch.randn calls).
    slab = jax.random.normal(key, _SLAB_SHAPE, jnp.float32)
    return _sdpa_call(slab).reshape(1, _M, _DV)


def _reference(input_tensor, key):
    """Pure-JAX (exact f32) reference for correctness checking."""
    del input_tensor
    slab = jax.random.normal(key, _SLAB_SHAPE, jnp.float32)
    q_raw = slab[0:_QR, _QO:_QO + _QC]
    k     = slab[0:_KR, _KO:_KO + _KC]
    v_raw = slab[0:_VR, _VO:_VO + _VC]
    bias  = slab[0:_BR, _BO:_BO + _BC]
    s = (q_raw.T @ k) / math.sqrt(k.shape[-1]) + bias
    p = jax.nn.softmax(jax.nn.softmax(s, axis=-1), axis=-1)
    return (p @ v_raw.T).reshape(1, _M, _DV)


if __name__ == "__main__":
    root = jax.random.PRNGKey(0)
    k_x, k_ops = jax.random.split(root)
    # Example "input_tensor" (unused by the module's forward, as in PyTorch).
    x = jax.random.normal(k_x, (2, 4, 16, 16), jnp.float32)

    out = jax.block_until_ready(model_forward(x, k_ops))
    ref = _reference(x, k_ops)

    assert out.shape == (1, _M, _DV), out.shape
    # Tolerance vs the exact-f32 reference budgets for: bf16 MXU operand
    # rounding (~2^-9 relative) through two matmuls, two EUP approximate
    # reciprocals, and the (mathematically exact) skipped max-subtraction in
    # softmax #2.  Typical per-element error is a few 1e-3 on outputs of
    # std ~0.3.
    assert jnp.allclose(out, ref, atol=1.5e-2, rtol=1.5e-2), "mismatch vs reference"

    print("KERNEL_OK")
</pallas_src>

<mosaic_0001>
module attributes {stable_mosaic.version = 11 : i64} {
  func.func @_sdpa_kernel(%arg0: memref<8x128xf32, #tpu.memory_space<vmem>>, %arg1: memref<5x6xf32, #tpu.memory_space<vmem>>) attributes {dimension_semantics = [], scalar_prefetch = 0 : i64, scratch_operands = 0 : i64, tpu.core_type = #tpu.core_type<tc>} {
    %c0 = arith.constant 0 : index
    %c0_0 = arith.constant 0 : index
    %0 = vector.load %arg0[%c0, %c0_0] : memref<8x128xf32, #tpu.memory_space<vmem>>, vector<6x5xf32>
    %c0_1 = arith.constant 0 : index
    %c16 = arith.constant 16 : index
    %1 = vector.load %arg0[%c0_1, %c16] : memref<8x128xf32, #tpu.memory_space<vmem>>, vector<6x10xf32>
    %c0_2 = arith.constant 0 : index
    %c32 = arith.constant 32 : index
    %2 = vector.load %arg0[%c0_2, %c32] : memref<8x128xf32, #tpu.memory_space<vmem>>, vector<6x10xf32>
    %c0_3 = arith.constant 0 : index
    %c48 = arith.constant 48 : index
    %3 = vector.load %arg0[%c0_3, %c48] : memref<8x128xf32, #tpu.memory_space<vmem>>, vector<5x10xf32>
    %4 = arith.truncf %0 : vector<6x5xf32> to vector<6x5xbf16>
    %5 = arith.truncf %1 : vector<6x10xf32> to vector<6x10xbf16>
    %cst = arith.constant dense<0.000000e+00> : vector<5x10xf32>
    %6 = tpu.matmul %4, %5, %cst {dimension_numbers = #tpu.dot_dimension_numbers<[0], [0], [1], [1], [0, 1, 1, 1], [], []>} : vector<6x5xbf16>, vector<6x10xbf16>, vector<5x10xf32> -> vector<5x10xf32>
    %cst_4 = arith.constant 0.316227764 : f32
    %7 = vector.broadcast %cst_4 : f32 to vector<5x10xf32>
    %8 = arith.mulf %6, %7 : vector<5x10xf32>
    %9 = arith.addf %8, %3 : vector<5x10xf32>
    %cst_5 = arith.constant dense<0xFF800000> : vector<5xf32>
    %10 = vector.multi_reduction <maximumf>, %9, %cst_5 [1] : vector<5x10xf32> to vector<5xf32>
    %11 = vector.shape_cast %10 : vector<5xf32> to vector<5x1xf32>
    %12 = vector.broadcast %11 : vector<5x1xf32> to vector<5x10xf32>
    %13 = arith.subf %9, %12 : vector<5x10xf32>
    %14 = math.exp %13 : vector<5x10xf32>
    %cst_6 = arith.constant dense<0.000000e+00> : vector<5xf32>
    %15 = vector.multi_reduction <add>, %14, %cst_6 [1] : vector<5x10xf32> to vector<5xf32>
    %16 = vector.shape_cast %15 : vector<5xf32> to vector<5x1xf32>
    %17 = tpu.reciprocal %16 {approx = true} : vector<5x1xf32> -> vector<5x1xf32>
    %18 = vector.broadcast %17 : vector<5x1xf32> to vector<5x10xf32>
    %19 = arith.mulf %14, %18 : vector<5x10xf32>
    %20 = math.exp %19 : vector<5x10xf32>
    %cst_7 = arith.constant dense<0.000000e+00> : vector<5xf32>
    %21 = vector.multi_reduction <add>, %20, %cst_7 [1] : vector<5x10xf32> to vector<5xf32>
    %22 = vector.shape_cast %21 : vector<5xf32> to vector<5x1xf32>
    %23 = tpu.reciprocal %22 {approx = true} : vector<5x1xf32> -> vector<5x1xf32>
    %24 = vector.broadcast %23 : vector<5x1xf32> to vector<5x10xf32>
    %25 = arith.mulf %20, %24 : vector<5x10xf32>
    %26 = arith.truncf %25 : vector<5x10xf32> to vector<5x10xbf16>
    %27 = arith.truncf %2 : vector<6x10xf32> to vector<6x10xbf16>
    %cst_8 = arith.constant dense<0.000000e+00> : vector<5x6xf32>
    %28 = tpu.matmul %26, %27, %cst_8 {dimension_numbers = #tpu.dot_dimension_numbers<[1], [1], [0], [0], [0, 0, 1, 0], [], []>} : vector<5x10xbf16>, vector<6x10xbf16>, vector<5x6xf32> -> vector<5x6xf32>
    %c0_9 = arith.constant 0 : index
    %c0_10 = arith.constant 0 : index
    %29 = vector.load %arg1[%c0_9, %c0_10] : memref<5x6xf32, #tpu.memory_space<vmem>>, vector<5x6xf32>
    tpu.vector_store %arg1[%c0_9, %c0_10], %28 {strides = array<i32>} : memref<5x6xf32, #tpu.memory_space<vmem>>, vector<5x6xf32>,
    return
  }
}

</mosaic_0001>

<llo_original>
// kernel: model_forward.1
$region0: #{model_forward.1}
  #allocation0 [shape = 'u32[]', space=smem, size = 0x4, offset = 0x4, fixed_abs, tag = 'smem constant byte address 0x4 - core index']
  #allocation1 [shape = 'u32[72,128]{1,0:T(1,128)}', space=vmem, size = 0x9000, scoped, tag = 'internal scratch']
  %s0 = inlined_call_operand.vmem [shape: f32[8,128], index: 0, kind: input, shape index: {}]
  %s1 = inlined_call_operand.vmem [shape: f32[5,6], index: 1, kind: output, shape index: {}]
  %s2 = sld [smem:[#allocation0]]
  $region14: #{model_forward.1} parent=0
    _
  %s4 = ssub.s32 1, %s2
  %s5 = scalar_select 0, %s4, %s2
  // Predicated region
  $region2: #{model_forward.1} parent=0 // pred_check
    _
  $region3: #{model_forward.1} parent=0 // pred_check_branch
    %7 = sbr.rel (0) target = $region5
  $region4: #{model_forward.1} parent=0 // pred_region
    _
  $region5: #{model_forward.1} parent=0 // pred_fallthru
    _
  %v9 = vld [vmem:[%s0] sm:$0x3f]
  %v10 = vld [vmem:[%s0] sm:$0x1f]
  %v11 = vpack.c.bf16 %v9, %v9
  %12 = vxpose.xlu0.c.b16.start [1/8] %v11, 128
  %13 = vxpose.xlu0.c.b16.cont [2/8] 0, 128
  %14 = vxpose.xlu0.c.b16.cont [3/8] 0, 128
  %15 = vxpose.xlu0.c.b16.cont [4/8] 0, 128
  %16 = vxpose.xlu0.c.b16.cont [5/8] 0, 128
  %17 = vxpose.xlu0.c.b16.cont [6/8] 0, 128
  %18 = vxpose.xlu0.c.b16.cont [7/8] 0, 128
  %19 = vxpose.xlu0.c.b16.end [8/8] 0, 128
  %v20 = vpop.trf.xlu0
  %v21 = vpop.trf.xlu0
  %v22 = vpop.trf.xlu0
  %v23 = vpop.trf.xlu0
  %v24 = vpop.trf.xlu0
  %v25 = vpop.trf.xlu0
  %v26 = vpop.trf.xlu0
  %v27 = vpop.trf.xlu0
  %29 = vrot.lane.b32.xlu0 %v11, 112
  %v30 = vpop.permute.xlu0 %29
  %vm31 = vcmask 48128
  %v33 = vsel %vm31, %v20, 0
  %vm35 = vcmask 1042432
  %v37 = vsel %vm35, %v30, 0
  %39 = vmatpush.bf16.msra.mxu0 0
  %40 = vmatpush.bf16.msra.mxu0 0
  %41 = vmatpush.bf16.msra.mxu0 0
  %42 = vmatpush.bf16.msra.mxu0 0
  %43 = vmatpush.bf16.msra.mxu0 0
  %44 = vmatpush.bf16.msra.mxu0 0
  %45 = vmatpush.bf16.msra.mxu0 0
  %46 = vmatpush.bf16.msra.mxu0 %v37
  %47 = vmatmul.bf16.gmra.mxu0 %v33
  %v48 = vpop.f32.mrf.mxu0
  %v49 = vadd.f32 0.0, %v48
  %v50 = vpop.f32.mrf.mxu0
  %51 = vdwg.mxu0
  %v52 = vmul.f32 %v49, 0.31622776
  %54 = vrot.lane.b32.xlu0 %v10, 80
  %v55 = vpop.permute.xlu0 %54
  %v57 = vadd.f32 %v52, %v55
  %vm58 = vcmask 77824
  %v59 = vsel %vm58, %v57, -inf
  %60 = vmax.xlane.f32.xlu0 %v59
  %v61 = vpop.xlane.xlu0 %60
  %v62 = vsub.f32 %v57, %v61
  %v63 = vmul.f32 %v62, 1.442695
  %v64 = vpow.pop %v63
  %v65 = vsel %vm58, %v64, 0.0
  %66 = vadd.xlane.f32.xlu0 %v65
  %v67 = vpop.xlane.xlu0 %66
  %v68 = vrcp.pop %v67
  %v69 = vmul.f32 %v64, %v68
  %v70 = vmul.f32 %v69, 1.442695
  %v71 = vpow.pop %v70
  %v72 = vsel %vm58, %v71, 0.0
  %73 = vadd.xlane.f32.xlu0 %v72
  %v74 = vpop.xlane.xlu0 %73
  %v75 = vrcp.pop %v74
  %v76 = vmul.f32 %v71, %v75
  %v77 = vpack.c.bf16 %v76, %v76
  %78 = vrot.lane.b32.xlu0 %v11, 96
  %v79 = vpop.permute.xlu0 %78
  %vm80 = vcmask 80896
  %v82 = vsel %vm80, %v77, 0
  %v85 = vsel %vm80, %v79, 0
  %87 = vmatpush.bf16.xpose.msra.mxu0 0
  %88 = vmatpush.bf16.xpose.msra.mxu0 0
  %89 = vmatpush.bf16.xpose.msra.mxu0 0
  %90 = vmatpush.bf16.xpose.msra.mxu0 0
  %91 = vmatpush.bf16.xpose.msra.mxu0 0
  %92 = vmatpush.bf16.xpose.msra.mxu0 0
  %93 = vmatpush.bf16.xpose.msra.mxu0 0
  %94 = vmatpush.bf16.xpose.msra.mxu0 %v85
  %95 = vmatmul.bf16.gmra.mxu0 %v82
  %v96 = vpop.f32.mrf.mxu0
  %v97 = vadd.f32 0.0, %v96
  %v98 = vpop.f32.mrf.mxu0
  %99 = vdwg.mxu0
  %vm100 = vcmask 45056
  %101 = vst.msk [vmem:[%s1] sm:$0x1f] %vm100, %v97
  // Predicated region
  $region6: #{model_forward.1} parent=0 // pred_check
    _
  $region7: #{model_forward.1} parent=0 // pred_check_branch
    %103 = sbr.rel (0) target = $region9
  $region8: #{model_forward.1} parent=0 // pred_region
    _
  $region9: #{model_forward.1} parent=0 // pred_fallthru
    _
  // Predicated region
  $region10: #{model_forward.1} parent=0 // pred_check
    _
  $region11: #{model_forward.1} parent=0 // pred_check_branch
    %105 = sbr.rel (0) target = $region13
  $region12: #{model_forward.1} parent=0 // pred_region
    _
  $region13: #{model_forward.1} parent=0 // pred_fallthru
    _

</llo_original>
